<compile_context>
chip_gen: v6e
topology: v6e:2x2x1
jax: 0.10.0
libtpu: 0.0.40
codegen_flags: <defaults>
</compile_context>

<pallas_src>
import numpy as np
import jax
import jax.numpy as jnp
from jax.experimental import pallas as pl
from jax.experimental.pallas import tpu as pltpu


_VMEM_BUDGET = 24 * 1024 * 1024   # tile-selection budget (leaves headroom on v7x 64 MiB)
_VMEM_LIMIT = 48 * 1024 * 1024    # scoped-VMEM limit handed to Mosaic (<= all chips' physical)


def _round_up(a: int, m: int) -> int:
    return (a + m - 1) // m * m


def make_mlp_kernel(n_hidden: int):
    """Full MLP per grid step.

    Used for (a) the no-N-tiling fast path (w_last resident) and (b) the
    recompute-tiled path (w_last streamed per N tile, hidden stack recomputed
    so both grid axes can be 'parallel').
    """

    def kernel(*refs):
        x_ref = refs[0]
        hidden_refs = refs[1:1 + 2 * n_hidden]       # (w0, b0, w1, b1, ...)
        w_last_ref = refs[1 + 2 * n_hidden]
        b_last_ref = refs[2 + 2 * n_hidden]
        out_ref = refs[3 + 2 * n_hidden]

        h = x_ref[...].astype(jnp.bfloat16)
        for i in range(n_hidden):
            w = hidden_refs[2 * i][...]               # bf16 (in, out)
            b = hidden_refs[2 * i + 1][...]           # f32  (1, out)
            h = jnp.dot(h, w, preferred_element_type=jnp.float32) + b
            h = jnp.maximum(h, 0.0).astype(jnp.bfloat16)
        y = jnp.dot(h, w_last_ref[...],
                    preferred_element_type=jnp.float32) + b_last_ref[...]
        out_ref[...] = y.astype(out_ref.dtype)

    return kernel


def make_cached_kernel(n_hidden: int):
    """N-tiled variant: hidden stack runs once per batch tile (j == 0), its
    bf16 activation is parked in VMEM scratch and reused for every N tile.

    INVARIANT: the N grid axis must be the innermost, sequentially iterated
    ('arbitrary') axis; otherwise the j == 0 cache is invalid.
    """

    def kernel(*refs):
        x_ref = refs[0]
        hidden_refs = refs[1:1 + 2 * n_hidden]
        w_last_ref = refs[1 + 2 * n_hidden]
        b_last_ref = refs[2 + 2 * n_hidden]
        out_ref = refs[3 + 2 * n_hidden]
        h_scratch = refs[4 + 2 * n_hidden]            # (tile_B, hidden_dim) bf16

        @pl.when(pl.program_id(1) == 0)
        def _():
            h = x_ref[...].astype(jnp.bfloat16)
            for i in range(n_hidden):
                w = hidden_refs[2 * i][...]
                b = hidden_refs[2 * i + 1][...]
                h = jnp.dot(h, w, preferred_element_type=jnp.float32) + b
                h = jnp.maximum(h, 0.0).astype(jnp.bfloat16)
            h_scratch[...] = h

        y = jnp.dot(h_scratch[...], w_last_ref[...],
                    preferred_element_type=jnp.float32) + b_last_ref[...]
        out_ref[...] = y.astype(out_ref.dtype)

    return kernel


def init_mlp_params(key, input_dim, output_dim, hidden_dim, num_layers):
    """Deterministic init mirroring nn.Linear default U[-1/sqrt(fan_in), +]."""
    dims = [input_dim] + [hidden_dim] * num_layers + [output_dim]
    params = []
    for i in range(len(dims) - 1):
        key, kw, kb = jax.random.split(key, 3)
        bound = 1.0 / np.sqrt(dims[i])
        w = jax.random.uniform(kw, (dims[i], dims[i + 1]), jnp.float32,
                               minval=-bound, maxval=bound)
        b = jax.random.uniform(kb, (dims[i + 1],), jnp.float32,
                               minval=-bound, maxval=bound)
        params.append((w, b))
    return params


def image_mlp_decoder(x, params, *, channels, height, width,
                      _force_path=None, _max_tile_n=2048):
    """x: (B, input_dim) f32 -> (B, channels, height, width).

    _force_path / _max_tile_n are testing hooks ("fast" | "cached" |
    "recompute") to exercise a specific code path at small shapes.
    """
    B, input_dim = x.shape
    n_hidden = len(params) - 1
    hidden_dim = params[-1][0].shape[0]
    out_dim = params[-1][0].shape[1]
    assert out_dim == channels * height * width

    # ---- batch tile: multiple of 16 (bf16 sublane packing), cap 256 --------
    tile_B = min(256, _round_up(B, 16))
    pad_B = _round_up(B, tile_B)
    grid_B = pad_B // tile_B
    x_p = x if pad_B == B else jnp.zeros((pad_B, input_dim), x.dtype).at[:B].set(x)

    w_last, b_last = params[-1]

    # ---- VMEM accounting shared by all paths -------------------------------
    resident_hidden = sum(w.size * 2 + b.size * 4 for w, _b in params[:-1]
                          for b in (_b,))
    x_stream = tile_B * input_dim * 4 * 2             # double-buffered input

    pad_N_full = _round_up(out_dim, 128)
    fast_bytes = (resident_hidden + x_stream
                  + hidden_dim * pad_N_full * 2       # resident w_last, Buffered(1)
                  + pad_N_full * 4                    # resident b_last
                  + tile_B * pad_N_full * 4 * 2)      # output tile, double-buffered
    if _force_path is None:
        use_fast = fast_bytes <= _VMEM_BUDGET
    else:
        use_fast = (_force_path == "fast")

    # ---- flatten hidden params: bf16 weights (MXU-native), f32 biases ------
    flat_hidden = []
    for w, b in params[:-1]:
        flat_hidden.append(w.astype(jnp.bfloat16))
        flat_hidden.append(b.reshape(1, -1).astype(jnp.float32))

    if use_fast:
        # -------- fast path: 1-D batch grid, everything resident ------------
        pad_N = pad_N_full
        if pad_N != out_dim:
            w_last = jnp.zeros((hidden_dim, pad_N), w_last.dtype).at[:, :out_dim].set(w_last)
            b_last = jnp.zeros((pad_N,), b_last.dtype).at[:out_dim].set(b_last)

        in_specs = [pl.BlockSpec((tile_B, input_dim), lambda i: (i, 0))]
        for w, b in params[:-1]:
            in_specs.append(pl.BlockSpec(w.shape, lambda i: (0, 0),
                                         pipeline_mode=pl.Buffered(1)))
            in_specs.append(pl.BlockSpec((1, w.shape[1]), lambda i: (0, 0),
                                         pipeline_mode=pl.Buffered(1)))
        in_specs.append(pl.BlockSpec((hidden_dim, pad_N), lambda i: (0, 0),
                                     pipeline_mode=pl.Buffered(1)))
        in_specs.append(pl.BlockSpec((1, pad_N), lambda i: (0, 0),
                                     pipeline_mode=pl.Buffered(1)))
        out_specs = pl.BlockSpec((tile_B, pad_N), lambda i: (i, 0))

        grid = (grid_B,)
        grid_N = 1
        dim_sem = ("parallel",)
        kernel = make_mlp_kernel(n_hidden)
        scratch_shapes = []
        hidden_passes = 1
        w_last_reads = 1
    else:
        # -------- tiled path: stream w_last along N -------------------------
        if _force_path is None:
            recompute = (grid_B == 1 and hidden_dim <= 512)
        else:
            recompute = (_force_path == "recompute")

        scratch_bytes = 0 if recompute else tile_B * hidden_dim * 2
        remaining = max(0, _VMEM_BUDGET - resident_hidden - x_stream - scratch_bytes)
        per_col = hidden_dim * 2 * 2 + 4 * 2 + tile_B * 4 * 2  # w stream + bias + out
        max_tile_n = max(128, (remaining // per_col) // 128 * 128)
        tile_N_cap = int(min(_max_tile_n, max_tile_n, _round_up(out_dim, 128)))
        if out_dim % 128 == 0:
            # prefer a divisor of out_dim -> pad_N == out_dim (no padded writes)
            tile_N = 128
            t = 128
            while t <= tile_N_cap:
                if out_dim % t == 0:
                    tile_N = t
                t += 128
        else:
            tile_N = tile_N_cap
        pad_N = _round_up(out_dim, tile_N)
        if pad_N != out_dim:
            w_last = jnp.zeros((hidden_dim, pad_N), w_last.dtype).at[:, :out_dim].set(w_last)
            b_last = jnp.zeros((pad_N,), b_last.dtype).at[:out_dim].set(b_last)
        grid_N = pad_N // tile_N
        grid = (grid_B, grid_N)

        in_specs = [pl.BlockSpec((tile_B, input_dim), lambda i, j: (i, 0))]
        for w, b in params[:-1]:
            in_specs.append(pl.BlockSpec(w.shape, lambda i, j: (0, 0),
                                         pipeline_mode=pl.Buffered(1)))
            in_specs.append(pl.BlockSpec((1, w.shape[1]), lambda i, j: (0, 0),
                                         pipeline_mode=pl.Buffered(1)))
        in_specs.append(pl.BlockSpec((hidden_dim, tile_N), lambda i, j: (0, j)))
        in_specs.append(pl.BlockSpec((1, tile_N), lambda i, j: (0, j)))
        out_specs = pl.BlockSpec((tile_B, tile_N), lambda i, j: (i, j))

        if recompute:
            # Hidden stack is cheap: recompute per N tile so BOTH axes can be
            # sharded across TensorCores (v7x) even when grid_B == 1.
            kernel = make_mlp_kernel(n_hidden)
            scratch_shapes = []
            dim_sem = ("parallel", "parallel")
            hidden_passes = grid_N
            w_last_reads = 1
        else:
            # Cache hidden activation at j == 0.  N axis MUST stay 'arbitrary'.
            kernel = make_cached_kernel(n_hidden)
            scratch_shapes = [pltpu.VMEM((tile_B, hidden_dim), jnp.bfloat16)]
            dim_sem = ("parallel", "arbitrary")
            hidden_passes = 1
            w_last_reads = grid_B

    # ---- advisory cost estimate --------------------------------------------
    hidden_flops_row = 2 * (input_dim * hidden_dim
                            + max(0, n_hidden - 1) * hidden_dim * hidden_dim)
    last_flops_row = 2 * hidden_dim * pad_N
    flops = pad_B * (hidden_flops_row * hidden_passes + last_flops_row)
    bytes_accessed = (x_p.size * 4
                      + sum(w.size * 2 + b.size * 4 for w, b in params[:-1])
                      + w_last.size * 2 * w_last_reads
                      + pad_N * 4
                      + pad_B * pad_N * 4)

    y = pl.pallas_call(
        kernel,
        out_shape=jax.ShapeDtypeStruct((pad_B, pad_N), x.dtype),
        grid=grid,
        in_specs=in_specs,
        out_specs=out_specs,
        scratch_shapes=scratch_shapes,
        compiler_params=pltpu.CompilerParams(
            dimension_semantics=dim_sem,
            vmem_limit_bytes=_VMEM_LIMIT),
        cost_estimate=pl.CostEstimate(
            flops=flops, transcendentals=0, bytes_accessed=bytes_accessed),
    )(x_p, *flat_hidden,
      w_last.astype(jnp.bfloat16),
      b_last.reshape(1, -1).astype(jnp.float32))

    if pad_B != B or pad_N != out_dim:
        y = y[:B, :out_dim]
    # Row-major reinterpretation identical to torch .view(-1, C, H, W).
    return y.reshape(B, channels, height, width)


def _reference(x, params):
    """Pure-JAX reference with the same bf16-weight / f32-accum arithmetic."""
    n = len(params)
    h = x
    for i, (w, b) in enumerate(params):
        h = jnp.dot(h.astype(jnp.bfloat16), w.astype(jnp.bfloat16),
                    preferred_element_type=jnp.float32) + b
        if i < n - 1:
            h = jnp.maximum(h, 0.0)
    return h


if __name__ == "__main__":
    # Small shapes consistent with ImageMLPDecoder(height, width, channels, input_dim)
    height, width, channels = 16, 16, 4
    input_dim, hidden_dim, num_layers = 32, 128, 3
    batch = 2

    key = jax.random.PRNGKey(0)
    key, kx = jax.random.split(key)
    x = jax.random.normal(kx, (batch, input_dim), dtype=jnp.float32)

    params = init_mlp_params(
        key,
        input_dim=input_dim,
        output_dim=height * width * channels,
        hidden_dim=hidden_dim,
        num_layers=num_layers,
    )

    ref = np.asarray(_reference(x, params).reshape(batch, channels, height, width))

    # Default (fast, no-N-tiling) path — the one these shapes select.
    out = image_mlp_decoder(x, params, channels=channels, height=height, width=width)
    out = jax.block_until_ready(out)
    assert out.shape == (batch, channels, height, width)
    np.testing.assert_allclose(np.asarray(out), ref, rtol=1e-3, atol=1e-3)

    # Exercise the N-tiled paths too (forced, small tile_N) to keep them honest.
    for path in ("cached", "recompute"):
        out_p = image_mlp_decoder(x, params, channels=channels, height=height,
                                  width=width, _force_path=path, _max_tile_n=256)
        out_p = jax.block_until_ready(out_p)
        np.testing.assert_allclose(np.asarray(out_p), ref, rtol=1e-3, atol=1e-3)

    print("KERNEL_OK")
</pallas_src>

<mosaic_0001>
module attributes {stable_mosaic.version = 11 : i64} {
  func.func @kernel(%arg0: i32, %arg1: memref<16x32xf32, #tpu.memory_space<vmem>>, %arg2: memref<32x128xbf16, #tpu.memory_space<vmem>>, %arg3: memref<1x128xf32, #tpu.memory_space<vmem>>, %arg4: memref<128x128xbf16, #tpu.memory_space<vmem>>, %arg5: memref<1x128xf32, #tpu.memory_space<vmem>>, %arg6: memref<128x128xbf16, #tpu.memory_space<vmem>>, %arg7: memref<1x128xf32, #tpu.memory_space<vmem>>, %arg8: memref<128x1024xbf16, #tpu.memory_space<vmem>>, %arg9: memref<1x1024xf32, #tpu.memory_space<vmem>>, %arg10: memref<16x1024xf32, #tpu.memory_space<vmem>>) attributes {dimension_semantics = [#tpu.dimension_semantics<parallel>], iteration_bounds = array<i64: 1>, scalar_prefetch = 0 : i64, scratch_operands = 0 : i64, tpu.core_type = #tpu.core_type<tc>, window_params = [{transform_indices = @transform_0, window_bounds = array<i64: 16, 32>}, {pipeline_mode = #tpu.pipeline_mode<synchronous>, transform_indices = @transform_1, window_bounds = array<i64: 32, 128>}, {pipeline_mode = #tpu.pipeline_mode<synchronous>, transform_indices = @transform_2, window_bounds = array<i64: 1, 128>}, {pipeline_mode = #tpu.pipeline_mode<synchronous>, transform_indices = @transform_3, window_bounds = array<i64: 128, 128>}, {pipeline_mode = #tpu.pipeline_mode<synchronous>, transform_indices = @transform_4, window_bounds = array<i64: 1, 128>}, {pipeline_mode = #tpu.pipeline_mode<synchronous>, transform_indices = @transform_5, window_bounds = array<i64: 128, 128>}, {pipeline_mode = #tpu.pipeline_mode<synchronous>, transform_indices = @transform_6, window_bounds = array<i64: 1, 128>}, {pipeline_mode = #tpu.pipeline_mode<synchronous>, transform_indices = @transform_7, window_bounds = array<i64: 128, 1024>}, {pipeline_mode = #tpu.pipeline_mode<synchronous>, transform_indices = @transform_8, window_bounds = array<i64: 1, 1024>}, {transform_indices = @transform_9, window_bounds = array<i64: 16, 1024>}]} {
    %c0 = arith.constant 0 : index
    %c0_0 = arith.constant 0 : index
    %0 = vector.load %arg1[%c0, %c0_0] : memref<16x32xf32, #tpu.memory_space<vmem>>, vector<16x32xf32>
    %1 = arith.truncf %0 : vector<16x32xf32> to vector<16x32xbf16>
    %c0_1 = arith.constant 0 : index
    %c0_2 = arith.constant 0 : index
    %2 = vector.load %arg2[%c0_1, %c0_2] : memref<32x128xbf16, #tpu.memory_space<vmem>>, vector<32x128xbf16>
    %c0_3 = arith.constant 0 : index
    %c0_4 = arith.constant 0 : index
    %3 = vector.load %arg3[%c0_3, %c0_4] : memref<1x128xf32, #tpu.memory_space<vmem>>, vector<1x128xf32>
    %cst = arith.constant dense<0.000000e+00> : vector<16x128xf32>
    %4 = tpu.matmul %1, %2, %cst {dimension_numbers = #tpu.dot_dimension_numbers<[1], [0], [0], [1], [0, 0, 1, 1], [], []>} : vector<16x32xbf16>, vector<32x128xbf16>, vector<16x128xf32> -> vector<16x128xf32>
    %5 = vector.broadcast %3 : vector<1x128xf32> to vector<16x128xf32>
    %6 = arith.addf %4, %5 : vector<16x128xf32>
    %cst_5 = arith.constant 0.000000e+00 : f32
    %7 = vector.broadcast %cst_5 : f32 to vector<16x128xf32>
    %8 = arith.maximumf %6, %7 : vector<16x128xf32>
    %9 = arith.truncf %8 : vector<16x128xf32> to vector<16x128xbf16>
    %c0_6 = arith.constant 0 : index
    %c0_7 = arith.constant 0 : index
    %10 = vector.load %arg4[%c0_6, %c0_7] : memref<128x128xbf16, #tpu.memory_space<vmem>>, vector<128x128xbf16>
    %c0_8 = arith.constant 0 : index
    %c0_9 = arith.constant 0 : index
    %11 = vector.load %arg5[%c0_8, %c0_9] : memref<1x128xf32, #tpu.memory_space<vmem>>, vector<1x128xf32>
    %cst_10 = arith.constant dense<0.000000e+00> : vector<16x128xf32>
    %12 = tpu.matmul %9, %10, %cst_10 {dimension_numbers = #tpu.dot_dimension_numbers<[1], [0], [0], [1], [0, 0, 1, 1], [], []>} : vector<16x128xbf16>, vector<128x128xbf16>, vector<16x128xf32> -> vector<16x128xf32>
    %13 = vector.broadcast %11 : vector<1x128xf32> to vector<16x128xf32>
    %14 = arith.addf %12, %13 : vector<16x128xf32>
    %cst_11 = arith.constant 0.000000e+00 : f32
    %15 = vector.broadcast %cst_11 : f32 to vector<16x128xf32>
    %16 = arith.maximumf %14, %15 : vector<16x128xf32>
    %17 = arith.truncf %16 : vector<16x128xf32> to vector<16x128xbf16>
    %c0_12 = arith.constant 0 : index
    %c0_13 = arith.constant 0 : index
    %18 = vector.load %arg6[%c0_12, %c0_13] : memref<128x128xbf16, #tpu.memory_space<vmem>>, vector<128x128xbf16>
    %c0_14 = arith.constant 0 : index
    %c0_15 = arith.constant 0 : index
    %19 = vector.load %arg7[%c0_14, %c0_15] : memref<1x128xf32, #tpu.memory_space<vmem>>, vector<1x128xf32>
    %cst_16 = arith.constant dense<0.000000e+00> : vector<16x128xf32>
    %20 = tpu.matmul %17, %18, %cst_16 {dimension_numbers = #tpu.dot_dimension_numbers<[1], [0], [0], [1], [0, 0, 1, 1], [], []>} : vector<16x128xbf16>, vector<128x128xbf16>, vector<16x128xf32> -> vector<16x128xf32>
    %21 = vector.broadcast %19 : vector<1x128xf32> to vector<16x128xf32>
    %22 = arith.addf %20, %21 : vector<16x128xf32>
    %cst_17 = arith.constant 0.000000e+00 : f32
    %23 = vector.broadcast %cst_17 : f32 to vector<16x128xf32>
    %24 = arith.maximumf %22, %23 : vector<16x128xf32>
    %25 = arith.truncf %24 : vector<16x128xf32> to vector<16x128xbf16>
    %c0_18 = arith.constant 0 : index
    %c0_19 = arith.constant 0 : index
    %26 = vector.load %arg8[%c0_18, %c0_19] : memref<128x1024xbf16, #tpu.memory_space<vmem>>, vector<128x1024xbf16>
    %cst_20 = arith.constant dense<0.000000e+00> : vector<16x1024xf32>
    %27 = tpu.matmul %25, %26, %cst_20 {dimension_numbers = #tpu.dot_dimension_numbers<[1], [0], [0], [1], [0, 0, 1, 1], [], []>} : vector<16x128xbf16>, vector<128x1024xbf16>, vector<16x1024xf32> -> vector<16x1024xf32>
    %c0_21 = arith.constant 0 : index
    %c0_22 = arith.constant 0 : index
    %28 = vector.load %arg9[%c0_21, %c0_22] : memref<1x1024xf32, #tpu.memory_space<vmem>>, vector<1x1024xf32>
    %29 = vector.broadcast %28 : vector<1x1024xf32> to vector<16x1024xf32>
    %30 = arith.addf %27, %29 : vector<16x1024xf32>
    %c0_23 = arith.constant 0 : index
    %c0_24 = arith.constant 0 : index
    %31 = vector.load %arg10[%c0_23, %c0_24] : memref<16x1024xf32, #tpu.memory_space<vmem>>, vector<16x1024xf32>
    tpu.vector_store %arg10[%c0_23, %c0_24], %30 {strides = array<i32>} : memref<16x1024xf32, #tpu.memory_space<vmem>>, vector<16x1024xf32>,
    return
  }
  func.func @transform_0(%arg0: i32) -> (i32, i32) {
    %c0_i32 = arith.constant 0 : i32
    %c0_i32_0 = arith.constant 0 : i32
    return %arg0, %c0_i32 : i32, i32
  }
  func.func @transform_1(%arg0: i32) -> (i32, i32) {
    %c0_i32 = arith.constant 0 : i32
    %c0_i32_0 = arith.constant 0 : i32
    %c0_i32_1 = arith.constant 0 : i32
    return %c0_i32, %c0_i32_0 : i32, i32
  }
  func.func @transform_2(%arg0: i32) -> (i32, i32) {
    %c0_i32 = arith.constant 0 : i32
    %c0_i32_0 = arith.constant 0 : i32
    %c0_i32_1 = arith.constant 0 : i32
    return %c0_i32, %c0_i32_0 : i32, i32
  }
  func.func @transform_3(%arg0: i32) -> (i32, i32) {
    %c0_i32 = arith.constant 0 : i32
    %c0_i32_0 = arith.constant 0 : i32
    %c0_i32_1 = arith.constant 0 : i32
    return %c0_i32, %c0_i32_0 : i32, i32
  }
  func.func @transform_4(%arg0: i32) -> (i32, i32) {
    %c0_i32 = arith.constant 0 : i32
    %c0_i32_0 = arith.constant 0 : i32
    %c0_i32_1 = arith.constant 0 : i32
    return %c0_i32, %c0_i32_0 : i32, i32
  }
  func.func @transform_5(%arg0: i32) -> (i32, i32) {
    %c0_i32 = arith.constant 0 : i32
    %c0_i32_0 = arith.constant 0 : i32
    %c0_i32_1 = arith.constant 0 : i32
    return %c0_i32, %c0_i32_0 : i32, i32
  }
  func.func @transform_6(%arg0: i32) -> (i32, i32) {
    %c0_i32 = arith.constant 0 : i32
    %c0_i32_0 = arith.constant 0 : i32
    %c0_i32_1 = arith.constant 0 : i32
    return %c0_i32, %c0_i32_0 : i32, i32
  }
  func.func @transform_7(%arg0: i32) -> (i32, i32) {
    %c0_i32 = arith.constant 0 : i32
    %c0_i32_0 = arith.constant 0 : i32
    %c0_i32_1 = arith.constant 0 : i32
    return %c0_i32, %c0_i32_0 : i32, i32
  }
  func.func @transform_8(%arg0: i32) -> (i32, i32) {
    %c0_i32 = arith.constant 0 : i32
    %c0_i32_0 = arith.constant 0 : i32
    %c0_i32_1 = arith.constant 0 : i32
    return %c0_i32, %c0_i32_0 : i32, i32
  }
  func.func @transform_9(%arg0: i32) -> (i32, i32) {
    %c0_i32 = arith.constant 0 : i32
    %c0_i32_0 = arith.constant 0 : i32
    return %arg0, %c0_i32 : i32, i32
  }
}

</mosaic_0001>

<llo_original>
// kernel: tpu_custom_call.1
$region0: #{tpu_custom_call.1}
  #allocation0 [shape = 'u32[]', space=smem, size = 0x4, offset = 0x4, fixed_abs, tag = 'smem constant byte address 0x4 - core index']
  #allocation1 [shape = 'u32[144,128]{1,0:T(1,128)}', space=vmem, size = 0x12000, scoped, tag = 'internal scratch']
  %s0 = inlined_call_operand.hbm [shape: f32[16,32], index: 0, kind: input, shape index: {}]
  %s1 = inlined_call_operand.hbm [shape: bf16[32,128], index: 1, kind: input, shape index: {}]
  %s2 = inlined_call_operand.vmem [shape: f32[1,128], index: 2, kind: input, shape index: {}]
  %s3 = inlined_call_operand.hbm [shape: bf16[128,128], index: 3, kind: input, shape index: {}]
  %s4 = inlined_call_operand.vmem [shape: f32[1,128], index: 4, kind: input, shape index: {}]
  %s5 = inlined_call_operand.hbm [shape: bf16[128,128], index: 5, kind: input, shape index: {}]
  %s6 = inlined_call_operand.vmem [shape: f32[1,128], index: 6, kind: input, shape index: {}]
  %s7 = inlined_call_operand.hbm [shape: bf16[128,1024], index: 7, kind: input, shape index: {}]
  %s8 = inlined_call_operand.vmem [shape: f32[1,1024], index: 8, kind: input, shape index: {}]
  %s9 = inlined_call_operand.hbm [shape: f32[16,1024], index: 9, kind: output, shape index: {}]
  %s10 = sld [smem:[#allocation0]]
  $region66: #{tpu_custom_call.1} parent=0
    _
  %s12 = ssub.s32 1, %s10
  %s13 = scalar_select 0, %s12, %s10
  $region1: #{tpu_custom_call.1} parent=0
    #allocation2 [shape = 'u8[8192]{0}', space=vmem, size = 0x2000, scoped, tag = 'input window, operand 0, single buffered']
    #allocation3 [shape = 's32[1]{0}', space=sflag, size = 0x4, scoped, tag = 'scoped memory for tpu_custom_call.1']
    #allocation4 [shape = 's32[1]{0}', space=sflag, size = 0x4, scoped, tag = 'scoped memory for tpu_custom_call.1']
    #allocation5 [shape = 'u8[8192]{0}', space=vmem, size = 0x2000, scoped, tag = 'input window, operand 1, single buffered']
    #allocation6 [shape = 's32[1]{0}', space=sflag, size = 0x4, scoped, tag = 'scoped memory for tpu_custom_call.1']
    #allocation7 [shape = 'u8[32768]{0}', space=vmem, size = 0x8000, scoped, tag = 'input window, operand 3, single buffered']
    #allocation8 [shape = 'u8[32768]{0}', space=vmem, size = 0x8000, scoped, tag = 'input window, operand 5, single buffered']
    #allocation9 [shape = 's32[1]{0}', space=sflag, size = 0x4, scoped, tag = 'scoped memory for tpu_custom_call.1']
    #allocation10 [shape = 'u8[262144]{0}', space=vmem, size = 0x40000, scoped, tag = 'input window, operand 7, single buffered']
    #allocation11 [shape = 'u8[65536]{0}', space=vmem, size = 0x10000, scoped, tag = 'output window, operand 0, single buffered']
    %14 = vsyncpa [#allocation3], 0
    %15 = vsyncpa [#allocation6], 0
    %16 = vsyncpa [#allocation9], 0
    %17 = vsyncpa [#allocation4], 0
    // Predicated region
    $region2: #{tpu_custom_call.1} parent=1 // pred_check
      _
    $region3: #{tpu_custom_call.1} parent=1 // pred_check_branch
      %19 = sbr.rel (0) target = $region5
    $region4: #{tpu_custom_call.1} parent=1 // pred_region
      %s21 = ssub.s32 256, 256
      %22 = vsyncadd [#allocation3], %s21
      %s23 = sshll.u32 [#allocation2], 4
      %s24 = int_to_ptr.vmem [resolvable:$true] %s23
      %29 = dma.hbm_to_vmem [thread:$0]  %s0, 256, %s24, [#allocation3], 128, 128, 8
    $region5: #{tpu_custom_call.1} parent=1 // pred_fallthru
      _
    // Predicated region
    $region6: #{tpu_custom_call.1} parent=1 // pred_check
      _
    $region7: #{tpu_custom_call.1} parent=1 // pred_check_branch
      %31 = sbr.rel (0) target = $region9
    $region8: #{tpu_custom_call.1} parent=1 // pred_region
      %s33 = ssub.s32 256, 256
      %34 = vsyncadd [#allocation6], %s33
      %s35 = sshll.u32 [#allocation5], 4
      %s36 = int_to_ptr.vmem [resolvable:$true] %s35
      %41 = dma.hbm_to_vmem [thread:$0]  %s1, 256, %s36, [#allocation6], 64, 64, 4
    $region9: #{tpu_custom_call.1} parent=1 // pred_fallthru
      _
    // Predicated region
    $region10: #{tpu_custom_call.1} parent=1 // pred_check
      _
    $region11: #{tpu_custom_call.1} parent=1 // pred_check_branch
      %43 = sbr.rel (0) target = $region13
    $region12: #{tpu_custom_call.1} parent=1 // pred_region
      _
    $region13: #{tpu_custom_call.1} parent=1 // pred_fallthru
      _
    // Predicated region
    $region14: #{tpu_custom_call.1} parent=1 // pred_check
      _
    $region15: #{tpu_custom_call.1} parent=1 // pred_check_branch
      %45 = sbr.rel (0) target = $region17
    $region16: #{tpu_custom_call.1} parent=1 // pred_region
      %s47 = ssub.s32 1024, 1024
      %48 = vsyncadd [#allocation6], %s47
      %s49 = sshll.u32 [#allocation7], 4
      %s50 = int_to_ptr.vmem [resolvable:$true] %s49
      %55 = dma.hbm_to_vmem [thread:$0]  %s3, 1024, %s50, [#allocation6], 64, 64, 4
    $region17: #{tpu_custom_call.1} parent=1 // pred_fallthru
      _
    // Predicated region
    $region18: #{tpu_custom_call.1} parent=1 // pred_check
      _
    $region19: #{tpu_custom_call.1} parent=1 // pred_check_branch
      %57 = sbr.rel (0) target = $region21
    $region20: #{tpu_custom_call.1} parent=1 // pred_region
      _
    $region21: #{tpu_custom_call.1} parent=1 // pred_fallthru
      _
    // Predicated region
    $region22: #{tpu_custom_call.1} parent=1 // pred_check
      _
    $region23: #{tpu_custom_call.1} parent=1 // pred_check_branch
      %59 = sbr.rel (0) target = $region25
    $region24: #{tpu_custom_call.1} parent=1 // pred_region
      %s61 = ssub.s32 1024, 1024
      %62 = vsyncadd [#allocation9], %s61
      %s63 = sshll.u32 [#allocation8], 4
      %s64 = int_to_ptr.vmem [resolvable:$true] %s63
      %69 = dma.hbm_to_vmem [thread:$0]  %s5, 1024, %s64, [#allocation9], 64, 64, 4
    $region25: #{tpu_custom_call.1} parent=1 // pred_fallthru
      _
    // Predicated region
    $region26: #{tpu_custom_call.1} parent=1 // pred_check
      _
    $region27: #{tpu_custom_call.1} parent=1 // pred_check_branch
      %71 = sbr.rel (0) target = $region29
    $region28: #{tpu_custom_call.1} parent=1 // pred_region
      _
    $region29: #{tpu_custom_call.1} parent=1 // pred_fallthru
      _
    // Predicated region
    $region30: #{tpu_custom_call.1} parent=1 // pred_check
      _
    $region31: #{tpu_custom_call.1} parent=1 // pred_check_branch
      %73 = sbr.rel (0) target = $region33
    $region32: #{tpu_custom_call.1} parent=1 // pred_region
      %s75 = ssub.s32 8192, 8192
      %76 = vsyncadd [#allocation9], %s75
      %s77 = sshll.u32 [#allocation10], 4
      %s78 = int_to_ptr.vmem [resolvable:$true] %s77
      %83 = dma.hbm_to_vmem [thread:$0]  %s7, 8192, %s78, [#allocation9], 512, 512, 32
    $region33: #{tpu_custom_call.1} parent=1 // pred_fallthru
      _
    // Predicated region
    $region34: #{tpu_custom_call.1} parent=1 // pred_check
      _
    $region35: #{tpu_custom_call.1} parent=1 // pred_check_branch
      %85 = sbr.rel (0) target = $region37
    $region36: #{tpu_custom_call.1} parent=1 // pred_region
      _
    $region37: #{tpu_custom_call.1} parent=1 // pred_fallthru
      _
    // Predicated region
    $region38: #{tpu_custom_call.1} parent=1 // pred_check
      _
    $region39: #{tpu_custom_call.1} parent=1 // pred_check_branch
      %87 = sbr.rel (0) target = $region41
    $region40: #{tpu_custom_call.1} parent=1 // pred_region
      %88 = dma.done [#allocation3], 256
    $region41: #{tpu_custom_call.1} parent=1 // pred_fallthru
      _
    // Predicated region
    $region42: #{tpu_custom_call.1} parent=1 // pred_check
      _
    $region43: #{tpu_custom_call.1} parent=1 // pred_check_branch
      %90 = sbr.rel (0) target = $region45
    $region44: #{tpu_custom_call.1} parent=1 // pred_region
      %91 = dma.done [#allocation6], 256
    $region45: #{tpu_custom_call.1} parent=1 // pred_fallthru
      _
    // Predicated region
    $region46: #{tpu_custom_call.1} parent=1 // pred_check
      _
    $region47: #{tpu_custom_call.1} parent=1 // pred_check_branch
      %93 = sbr.rel (0) target = $region49
    $region48: #{tpu_custom_call.1} parent=1 // pred_region
      %94 = dma.done [#allocation6], 1024
    $region49: #{tpu_custom_call.1} parent=1 // pred_fallthru
      _
    // Predicated region
    $region50: #{tpu_custom_call.1} parent=1 // pred_check
      _
    $region51: #{tpu_custom_call.1} parent=1 // pred_check_branch
      %96 = sbr.rel (0) target = $region53
    $region52: #{tpu_custom_call.1} parent=1 // pred_region
      %97 = dma.done [#allocation9], 1024
    $region53: #{tpu_custom_call.1} parent=1 // pred_fallthru
      _
    // Predicated region
    $region54: #{tpu_custom_call.1} parent=1 // pred_check
      _
    $region55: #{tpu_custom_call.1} parent=1 // pred_check_branch
      %99 = sbr.rel (0) target = $region57
    $region56: #{tpu_custom_call.1} parent=1 // pred_region
      %100 = dma.done [#allocation9], 8192
    $region57: #{tpu_custom_call.1} parent=1 // pred_fallthru
      _
    %v102 = vld [vmem:[#allocation2] sm:$0xff]
    %v103 = vld [vmem:[#allocation2 + $0x8] sm:$0xff]
    %v104 = vpack.c.bf16 %v103, %v102
    %v105 = vld [vmem:[#allocation5] sm:$0xf]
    %v106 = vld [vmem:[#allocation5 + $0x4] sm:$0xf]
    %v107 = vld [vmem:[#allocation5 + $0x8] sm:$0xf]
    %v108 = vld [vmem:[#allocation5 + $0xc] sm:$0xf]
    %v109 = vld [vmem:[%s2] sm:$0x1]
    %v111 = vlaneseq
    %v112 = vshrl.u32 %v111, 7
    %v113 = vsub.s32 0, %v112
    %v114 = vrot.slane %v109, %v113
    %v120 = vunpack.c.l.b16 %v105
    %v121 = vunpack.c.l.b16 %v106
    %v122 = vunpack.c.l.b16 %v107
    %v123 = vunpack.c.l.b16 %v108
    %v124 = vpack.c.b16 %v121, %v120
    %v125 = vpack.c.b16 %v123, %v122
    %vm128 = vcmask 261120
    %v130 = vsel %vm128, %v104, 0
    %132 = vmatprep.subr.bf16.mxu0 0
    %133 = vmatpush1.bf16.msra.mxu0 0
    %134 = vmatprep.subr.bf16.mxu0 0
    %135 = vmatpush1.bf16.msra.mxu0 0
    %136 = vmatprep.subr.bf16.mxu0 0
    %137 = vmatpush1.bf16.msra.mxu0 0
    %138 = vmatprep.subr.bf16.mxu0 0
    %139 = vmatpush1.bf16.msra.mxu0 0
    %140 = vmatprep.subr.bf16.mxu0 0
    %141 = vmatpush1.bf16.msra.mxu0 0
    %142 = vmatprep.subr.bf16.mxu0 0
    %143 = vmatpush1.bf16.msra.mxu0 0
    %144 = vmatprep.subr.bf16.mxu0 0
    %145 = vmatpush1.bf16.msra.mxu0 %v125
    %146 = vmatprep.subr.bf16.mxu0 0
    %147 = vmatpush1.bf16.msra.mxu0 %v124
    %148 = vmatprep.subr.bf16.mxu0 0
    %149 = vmatpush2.bf16.msra.mxu0 0
    %150 = vmatprep.subr.bf16.mxu0 0
    %151 = vmatpush2.bf16.msra.mxu0 0
    %152 = vmatprep.subr.bf16.mxu0 0
    %153 = vmatpush2.bf16.msra.mxu0 0
    %154 = vmatprep.subr.bf16.mxu0 0
    %155 = vmatpush2.bf16.msra.mxu0 0
    %156 = vmatprep.subr.bf16.mxu0 0
    %157 = vmatpush2.bf16.msra.mxu0 0
    %158 = vmatprep.subr.bf16.mxu0 0
    %159 = vmatpush2.bf16.msra.mxu0 0
    %160 = vmatprep.subr.bf16.mxu0 0
    %161 = vmatpush2.bf16.msra.mxu0 0
    %162 = vmatprep.subr.bf16.mxu0 0
    %163 = vmatpush2.bf16.msra.mxu0 0
    %164 = vmatprep.mubr.bf16.mxu0 0
    %165 = vmatmul.mubr.bf16.gmra.mxu0 %v130
    %v166 = vpop.f32.mrf.mxu0
    %v167 = vadd.f32 %v114, %v166
    %v168 = vpop.f32.mrf.mxu0
    %v169 = vpop.f32.mrf.mxu0
    %v170 = vadd.f32 %v114, %v169
    %v171 = vpop.f32.mrf.mxu0
    %172 = vdwg.mxu0
    %v173 = vmax.f32 %v167, 0.0
    %v174 = vmax.f32 %v170, 0.0
    %v175 = vpack.c.bf16 %v174, %v173
    %v176 = vld [vmem:[#allocation7] sm:$0xf]
    %v177 = vld [vmem:[#allocation7 + $0x4] sm:$0xf]
    %v178 = vld [vmem:[#allocation7 + $0x8] sm:$0xf]
    %v179 = vld [vmem:[#allocation7 + $0xc] sm:$0xf]
    %v180 = vld [vmem:[#allocation7 + $0x10] sm:$0xf]
    %v181 = vld [vmem:[#allocation7 + $0x14] sm:$0xf]
    %v182 = vld [vmem:[#allocation7 + $0x18] sm:$0xf]
    %v183 = vld [vmem:[#allocation7 + $0x1c] sm:$0xf]
    %v184 = vld [vmem:[#allocation7 + $0x20] sm:$0xf]
    %v185 = vld [vmem:[#allocation7 + $0x24] sm:$0xf]
    %v186 = vld [vmem:[#allocation7 + $0x28] sm:$0xf]
    %v187 = vld [vmem:[#allocation7 + $0x2c] sm:$0xf]
    %v188 = vld [vmem:[#allocation7 + $0x30] sm:$0xf]
    %v189 = vld [vmem:[#allocation7 + $0x34] sm:$0xf]
    %v190 = vld [vmem:[#allocation7 + $0x38] sm:$0xf]
    %v191 = vld [vmem:[#allocation7 + $0x3c] sm:$0xf]
    %v192 = vld [vmem:[%s4] sm:$0x1]
    %v194 = vlaneseq
    %v195 = vshrl.u32 %v194, 7
    %v196 = vsub.s32 0, %v195
    %v197 = vrot.slane %v192, %v196
    %v215 = vunpack.c.l.b16 %v176
    %v216 = vunpack.c.l.b16 %v177
    %v217 = vunpack.c.l.b16 %v178
    %v218 = vunpack.c.l.b16 %v179
    %v219 = vunpack.c.l.b16 %v180
    %v220 = vunpack.c.l.b16 %v181
    %v221 = vunpack.c.l.b16 %v182
    %v222 = vunpack.c.l.b16 %v183
    %v223 = vunpack.c.l.b16 %v184
    %v224 = vunpack.c.l.b16 %v185
    %v225 = vunpack.c.l.b16 %v186
    %v226 = vunpack.c.l.b16 %v187
    %v227 = vunpack.c.l.b16 %v188
    %v228 = vunpack.c.l.b16 %v189
    %v229 = vunpack.c.l.b16 %v190
    %v230 = vunpack.c.l.b16 %v191
    %v231 = vpack.c.b16 %v216, %v215
    %v232 = vpack.c.b16 %v218, %v217
    %v233 = vpack.c.b16 %v220, %v219
    %v234 = vpack.c.b16 %v222, %v221
    %v235 = vpack.c.b16 %v224, %v223
    %v236 = vpack.c.b16 %v226, %v225
    %v237 = vpack.c.b16 %v228, %v227
    %v238 = vpack.c.b16 %v230, %v229
    %247 = vmatprep.subr.bf16.mxu0 0
    %248 = vmatpush1.bf16.msra.mxu0 %v238
    %249 = vmatprep.subr.bf16.mxu0 0
    %250 = vmatpush1.bf16.msra.mxu0 %v237
    %251 = vmatprep.subr.bf16.mxu0 0
    %252 = vmatpush1.bf16.msra.mxu0 %v236
    %253 = vmatprep.subr.bf16.mxu0 0
    %254 = vmatpush1.bf16.msra.mxu0 %v235
    %255 = vmatprep.subr.bf16.mxu0 0
    %256 = vmatpush1.bf16.msra.mxu0 %v234
    %257 = vmatprep.subr.bf16.mxu0 0
    %258 = vmatpush1.bf16.msra.mxu0 %v233
    %259 = vmatprep.subr.bf16.mxu0 0
    %260 = vmatpush1.bf16.msra.mxu0 %v232
    %261 = vmatprep.subr.bf16.mxu0 0
    %262 = vmatpush1.bf16.msra.mxu0 %v231
    %263 = vmatprep.subr.bf16.mxu0 0
    %264 = vmatpush2.bf16.msra.mxu0 0
    %265 = vmatprep.subr.bf16.mxu0 0
    %266 = vmatpush2.bf16.msra.mxu0 0
    %267 = vmatprep.subr.bf16.mxu0 0
    %268 = vmatpush2.bf16.msra.mxu0 0
    %269 = vmatprep.subr.bf16.mxu0 0
    %270 = vmatpush2.bf16.msra.mxu0 0
    %271 = vmatprep.subr.bf16.mxu0 0
    %272 = vmatpush2.bf16.msra.mxu0 0
    %273 = vmatprep.subr.bf16.mxu0 0
    %274 = vmatpush2.bf16.msra.mxu0 0
    %275 = vmatprep.subr.bf16.mxu0 0
    %276 = vmatpush2.bf16.msra.mxu0 0
    %277 = vmatprep.subr.bf16.mxu0 0
    %278 = vmatpush2.bf16.msra.mxu0 0
    %279 = vmatprep.mubr.bf16.mxu0 0
    %280 = vmatmul.mubr.bf16.gmra.mxu0 %v175
    %v281 = vpop.f32.mrf.mxu0
    %v282 = vadd.f32 %v197, %v281
    %v283 = vpop.f32.mrf.mxu0
    %v284 = vpop.f32.mrf.mxu0
    %v285 = vadd.f32 %v197, %v284
    %v286 = vpop.f32.mrf.mxu0
    %287 = vdwg.mxu0
    %v288 = vmax.f32 %v282, 0.0
    %v289 = vmax.f32 %v285, 0.0
    %v290 = vpack.c.bf16 %v289, %v288
    %v291 = vld [vmem:[#allocation8] sm:$0xf]
    %v292 = vld [vmem:[#allocation8 + $0x4] sm:$0xf]
    %v293 = vld [vmem:[#allocation8 + $0x8] sm:$0xf]
    %v294 = vld [vmem:[#allocation8 + $0xc] sm:$0xf]
    %v295 = vld [vmem:[#allocation8 + $0x10] sm:$0xf]
    %v296 = vld [vmem:[#allocation8 + $0x14] sm:$0xf]
    %v297 = vld [vmem:[#allocation8 + $0x18] sm:$0xf]
    %v298 = vld [vmem:[#allocation8 + $0x1c] sm:$0xf]
    %v299 = vld [vmem:[#allocation8 + $0x20] sm:$0xf]
    %v300 = vld [vmem:[#allocation8 + $0x24] sm:$0xf]
    %v301 = vld [vmem:[#allocation8 + $0x28] sm:$0xf]
    %v302 = vld [vmem:[#allocation8 + $0x2c] sm:$0xf]
    %v303 = vld [vmem:[#allocation8 + $0x30] sm:$0xf]
    %v304 = vld [vmem:[#allocation8 + $0x34] sm:$0xf]
    %v305 = vld [vmem:[#allocation8 + $0x38] sm:$0xf]
    %v306 = vld [vmem:[#allocation8 + $0x3c] sm:$0xf]
    %v307 = vld [vmem:[%s6] sm:$0x1]
    %v309 = vlaneseq
    %v310 = vshrl.u32 %v309, 7
    %v311 = vsub.s32 0, %v310
    %v312 = vrot.slane %v307, %v311
    %v330 = vunpack.c.l.b16 %v291
    %v331 = vunpack.c.l.b16 %v292
    %v332 = vunpack.c.l.b16 %v293
    %v333 = vunpack.c.l.b16 %v294
    %v334 = vunpack.c.l.b16 %v295
    %v335 = vunpack.c.l.b16 %v296
    %v336 = vunpack.c.l.b16 %v297
    %v337 = vunpack.c.l.b16 %v298
    %v338 = vunpack.c.l.b16 %v299
    %v339 = vunpack.c.l.b16 %v300
    %v340 = vunpack.c.l.b16 %v301
    %v341 = vunpack.c.l.b16 %v302
    %v342 = vunpack.c.l.b16 %v303
    %v343 = vunpack.c.l.b16 %v304
    %v344 = vunpack.c.l.b16 %v305
    %v345 = vunpack.c.l.b16 %v306
    %v346 = vpack.c.b16 %v331, %v330
    %v347 = vpack.c.b16 %v333, %v332
    %v348 = vpack.c.b16 %v335, %v334
    %v349 = vpack.c.b16 %v337, %v336
    %v350 = vpack.c.b16 %v339, %v338
    %v351 = vpack.c.b16 %v341, %v340
    %v352 = vpack.c.b16 %v343, %v342
    %v353 = vpack.c.b16 %v345, %v344
    %362 = vmatprep.subr.bf16.mxu0 0
    %363 = vmatpush1.bf16.msra.mxu0 %v353
    %364 = vmatprep.subr.bf16.mxu0 0
    %365 = vmatpush1.bf16.msra.mxu0 %v352
    %366 = vmatprep.subr.bf16.mxu0 0
    %367 = vmatpush1.bf16.msra.mxu0 %v351
    %368 = vmatprep.subr.bf16.mxu0 0
    %369 = vmatpush1.bf16.msra.mxu0 %v350
    %370 = vmatprep.subr.bf16.mxu0 0
    %371 = vmatpush1.bf16.msra.mxu0 %v349
    %372 = vmatprep.subr.bf16.mxu0 0
    %373 = vmatpush1.bf16.msra.mxu0 %v348
    %374 = vmatprep.subr.bf16.mxu0 0
    %375 = vmatpush1.bf16.msra.mxu0 %v347
    %376 = vmatprep.subr.bf16.mxu0 0
    %377 = vmatpush1.bf16.msra.mxu0 %v346
    %378 = vmatprep.subr.bf16.mxu0 0
    %379 = vmatpush2.bf16.msra.mxu0 0
    %380 = vmatprep.subr.bf16.mxu0 0
    %381 = vmatpush2.bf16.msra.mxu0 0
    %382 = vmatprep.subr.bf16.mxu0 0
    %383 = vmatpush2.bf16.msra.mxu0 0
    %384 = vmatprep.subr.bf16.mxu0 0
    %385 = vmatpush2.bf16.msra.mxu0 0
    %386 = vmatprep.subr.bf16.mxu0 0
    %387 = vmatpush2.bf16.msra.mxu0 0
    %388 = vmatprep.subr.bf16.mxu0 0
    %389 = vmatpush2.bf16.msra.mxu0 0
    %390 = vmatprep.subr.bf16.mxu0 0
    %391 = vmatpush2.bf16.msra.mxu0 0
    %392 = vmatprep.subr.bf16.mxu0 0
    %393 = vmatpush2.bf16.msra.mxu0 0
    %394 = vmatprep.mubr.bf16.mxu0 0
    %395 = vmatmul.mubr.bf16.gmra.mxu0 %v290
    %v396 = vpop.f32.mrf.mxu0
    %v397 = vadd.f32 %v312, %v396
    %v398 = vpop.f32.mrf.mxu0
    %v399 = vpop.f32.mrf.mxu0
    %v400 = vadd.f32 %v312, %v399
    %v401 = vpop.f32.mrf.mxu0
    %402 = vdwg.mxu0
    %v403 = vmax.f32 %v397, 0.0
    %v404 = vmax.f32 %v400, 0.0
    %v405 = vpack.c.bf16 %v404, %v403
    %v406 = vld [vmem:[#allocation10] sm:$0xff]
    %v407 = vld [vmem:[#allocation10 + $0x8] sm:$0xff]
    %v408 = vld [vmem:[#allocation10 + $0x10] sm:$0xff]
    %v409 = vld [vmem:[#allocation10 + $0x18] sm:$0xff]
    %v410 = vld [vmem:[#allocation10 + $0x20] sm:$0xff]
    %v411 = vld [vmem:[#allocation10 + $0x28] sm:$0xff]
    %v412 = vld [vmem:[#allocation10 + $0x30] sm:$0xff]
    %v413 = vld [vmem:[#allocation10 + $0x38] sm:$0xff]
    %v414 = vld [vmem:[#allocation10 + $0x40] sm:$0xff]
    %v415 = vld [vmem:[#allocation10 + $0x48] sm:$0xff]
    %v416 = vld [vmem:[#allocation10 + $0x50] sm:$0xff]
    %v417 = vld [vmem:[#allocation10 + $0x58] sm:$0xff]
    %v418 = vld [vmem:[#allocation10 + $0x60] sm:$0xff]
    %v419 = vld [vmem:[#allocation10 + $0x68] sm:$0xff]
    %v420 = vld [vmem:[#allocation10 + $0x70] sm:$0xff]
    %v421 = vld [vmem:[#allocation10 + $0x78] sm:$0xff]
    %v422 = vld [vmem:[#allocation10 + $0x80] sm:$0xff]
    %v423 = vld [vmem:[#allocation10 + $0x88] sm:$0xff]
    %v424 = vld [vmem:[#allocation10 + $0x90] sm:$0xff]
    %v425 = vld [vmem:[#allocation10 + $0x98] sm:$0xff]
    %v426 = vld [vmem:[#allocation10 + $0xa0] sm:$0xff]
    %v427 = vld [vmem:[#allocation10 + $0xa8] sm:$0xff]
    %v428 = vld [vmem:[#allocation10 + $0xb0] sm:$0xff]
    %v429 = vld [vmem:[#allocation10 + $0xb8] sm:$0xff]
    %v430 = vld [vmem:[#allocation10 + $0xc0] sm:$0xff]
    %v431 = vld [vmem:[#allocation10 + $0xc8] sm:$0xff]
    %v432 = vld [vmem:[#allocation10 + $0xd0] sm:$0xff]
    %v433 = vld [vmem:[#allocation10 + $0xd8] sm:$0xff]
    %v434 = vld [vmem:[#allocation10 + $0xe0] sm:$0xff]
    %v435 = vld [vmem:[#allocation10 + $0xe8] sm:$0xff]
    %v436 = vld [vmem:[#allocation10 + $0xf0] sm:$0xff]
    %v437 = vld [vmem:[#allocation10 + $0xf8] sm:$0xff]
    %v438 = vld [vmem:[#allocation10 + $0x100] sm:$0xff]
    %v439 = vld [vmem:[#allocation10 + $0x108] sm:$0xff]
    %v440 = vld [vmem:[#allocation10 + $0x110] sm:$0xff]
    %v441 = vld [vmem:[#allocation10 + $0x118] sm:$0xff]
    %v442 = vld [vmem:[#allocation10 + $0x120] sm:$0xff]
    %v443 = vld [vmem:[#allocation10 + $0x128] sm:$0xff]
    %v444 = vld [vmem:[#allocation10 + $0x130] sm:$0xff]
    %v445 = vld [vmem:[#allocation10 + $0x138] sm:$0xff]
    %v446 = vld [vmem:[#allocation10 + $0x140] sm:$0xff]
    %v447 = vld [vmem:[#allocation10 + $0x148] sm:$0xff]
    %v448 = vld [vmem:[#allocation10 + $0x150] sm:$0xff]
    %v449 = vld [vmem:[#allocation10 + $0x158] sm:$0xff]
    %v450 = vld [vmem:[#allocation10 + $0x160] sm:$0xff]
    %v451 = vld [vmem:[#allocation10 + $0x168] sm:$0xff]
    %v452 = vld [vmem:[#allocation10 + $0x170] sm:$0xff]
    %v453 = vld [vmem:[#allocation10 + $0x178] sm:$0xff]
    %v454 = vld [vmem:[#allocation10 + $0x180] sm:$0xff]
    %v455 = vld [vmem:[#allocation10 + $0x188] sm:$0xff]
    %v456 = vld [vmem:[#allocation10 + $0x190] sm:$0xff]
    %v457 = vld [vmem:[#allocation10 + $0x198] sm:$0xff]
    %v458 = vld [vmem:[#allocation10 + $0x1a0] sm:$0xff]
    %v459 = vld [vmem:[#allocation10 + $0x1a8] sm:$0xff]
    %v460 = vld [vmem:[#allocation10 + $0x1b0] sm:$0xff]
    %v461 = vld [vmem:[#allocation10 + $0x1b8] sm:$0xff]
    %v462 = vld [vmem:[#allocation10 + $0x1c0] sm:$0xff]
    %v463 = vld [vmem:[#allocation10 + $0x1c8] sm:$0xff]
    %v464 = vld [vmem:[#allocation10 + $0x1d0] sm:$0xff]
    %v465 = vld [vmem:[#allocation10 + $0x1d8] sm:$0xff]
    %v466 = vld [vmem:[#allocation10 + $0x1e0] sm:$0xff]
    %v467 = vld [vmem:[#allocation10 + $0x1e8] sm:$0xff]
    %v468 = vld [vmem:[#allocation10 + $0x1f0] sm:$0xff]
    %v469 = vld [vmem:[#allocation10 + $0x1f8] sm:$0xff]
    %v470 = vld [vmem:[%s8] sm:$0xff]
    %v472 = vlaneseq
    %v473 = vshrl.u32 %v472, 7
    %v474 = vsub.s32 0, %v473
    %v475 = vrot.slane %v470, %v474
    %v476 = vlaneseq
    %v477 = vshrl.u32 %v476, 7
    %v478 = vsub.s32 1, %v477
    %v479 = vrot.slane %v470, %v478
    %v480 = vlaneseq
    %v481 = vshrl.u32 %v480, 7
    %v482 = vsub.s32 2, %v481
    %v483 = vrot.slane %v470, %v482
    %v484 = vlaneseq
    %v485 = vshrl.u32 %v484, 7
    %v486 = vsub.s32 3, %v485
    %v487 = vrot.slane %v470, %v486
    %v488 = vlaneseq
    %v489 = vshrl.u32 %v488, 7
    %v490 = vsub.s32 4, %v489
    %v491 = vrot.slane %v470, %v490
    %v492 = vlaneseq
    %v493 = vshrl.u32 %v492, 7
    %v494 = vsub.s32 5, %v493
    %v495 = vrot.slane %v470, %v494
    %v496 = vlaneseq
    %v497 = vshrl.u32 %v496, 7
    %v498 = vsub.s32 6, %v497
    %v499 = vrot.slane %v470, %v498
    %v500 = vlaneseq
    %v501 = vshrl.u32 %v500, 7
    %v502 = vsub.s32 7, %v501
    %v503 = vrot.slane %v470, %v502
    %v576 = vunpack.c.l.b16 %v406
    %v577 = vunpack.c.h.b16 %v406
    %v578 = vunpack.c.l.b16 %v407
    %v579 = vunpack.c.h.b16 %v407
    %v580 = vunpack.c.l.b16 %v408
    %v581 = vunpack.c.h.b16 %v408
    %v582 = vunpack.c.l.b16 %v409
    %v583 = vunpack.c.h.b16 %v409
    %v584 = vunpack.c.l.b16 %v410
    %v585 = vunpack.c.h.b16 %v410
    %v586 = vunpack.c.l.b16 %v411
    %v587 = vunpack.c.h.b16 %v411
    %v588 = vunpack.c.l.b16 %v412
    %v589 = vunpack.c.h.b16 %v412
    %v590 = vunpack.c.l.b16 %v413
    %v591 = vunpack.c.h.b16 %v413
    %v592 = vunpack.c.l.b16 %v414
    %v593 = vunpack.c.h.b16 %v414
    %v594 = vunpack.c.l.b16 %v415
    %v595 = vunpack.c.h.b16 %v415
    %v596 = vunpack.c.l.b16 %v416
    %v597 = vunpack.c.h.b16 %v416
    %v598 = vunpack.c.l.b16 %v417
    %v599 = vunpack.c.h.b16 %v417
    %v600 = vunpack.c.l.b16 %v418
    %v601 = vunpack.c.h.b16 %v418
    %v602 = vunpack.c.l.b16 %v419
    %v603 = vunpack.c.h.b16 %v419
    %v604 = vunpack.c.l.b16 %v420
    %v605 = vunpack.c.h.b16 %v420
    %v606 = vunpack.c.l.b16 %v421
    %v607 = vunpack.c.h.b16 %v421
    %v608 = vunpack.c.l.b16 %v422
    %v609 = vunpack.c.h.b16 %v422
    %v610 = vunpack.c.l.b16 %v423
    %v611 = vunpack.c.h.b16 %v423
    %v612 = vunpack.c.l.b16 %v424
    %v613 = vunpack.c.h.b16 %v424
    %v614 = vunpack.c.l.b16 %v425
    %v615 = vunpack.c.h.b16 %v425
    %v616 = vunpack.c.l.b16 %v426
    %v617 = vunpack.c.h.b16 %v426
    %v618 = vunpack.c.l.b16 %v427
    %v619 = vunpack.c.h.b16 %v427
    %v620 = vunpack.c.l.b16 %v428
    %v621 = vunpack.c.h.b16 %v428
    %v622 = vunpack.c.l.b16 %v429
    %v623 = vunpack.c.h.b16 %v429
    %v624 = vunpack.c.l.b16 %v430
    %v625 = vunpack.c.h.b16 %v430
    %v626 = vunpack.c.l.b16 %v431
    %v627 = vunpack.c.h.b16 %v431
    %v628 = vunpack.c.l.b16 %v432
    %v629 = vunpack.c.h.b16 %v432
    %v630 = vunpack.c.l.b16 %v433
    %v631 = vunpack.c.h.b16 %v433
    %v632 = vunpack.c.l.b16 %v434
    %v633 = vunpack.c.h.b16 %v434
    %v634 = vunpack.c.l.b16 %v435
    %v635 = vunpack.c.h.b16 %v435
    %v636 = vunpack.c.l.b16 %v436
    %v637 = vunpack.c.h.b16 %v436
    %v638 = vunpack.c.l.b16 %v437
    %v639 = vunpack.c.h.b16 %v437
    %v640 = vunpack.c.l.b16 %v438
    %v641 = vunpack.c.h.b16 %v438
    %v642 = vunpack.c.l.b16 %v439
    %v643 = vunpack.c.h.b16 %v439
    %v644 = vunpack.c.l.b16 %v440
    %v645 = vunpack.c.h.b16 %v440
    %v646 = vunpack.c.l.b16 %v441
    %v647 = vunpack.c.h.b16 %v441
    %v648 = vunpack.c.l.b16 %v442
    %v649 = vunpack.c.h.b16 %v442
    %v650 = vunpack.c.l.b16 %v443
    %v651 = vunpack.c.h.b16 %v443
    %v652 = vunpack.c.l.b16 %v444
    %v653 = vunpack.c.h.b16 %v444
    %v654 = vunpack.c.l.b16 %v445
    %v655 = vunpack.c.h.b16 %v445
    %v656 = vunpack.c.l.b16 %v446
    %v657 = vunpack.c.h.b16 %v446
    %v658 = vunpack.c.l.b16 %v447
    %v659 = vunpack.c.h.b16 %v447
    %v660 = vunpack.c.l.b16 %v448
    %v661 = vunpack.c.h.b16 %v448
    %v662 = vunpack.c.l.b16 %v449
    %v663 = vunpack.c.h.b16 %v449
    %v664 = vunpack.c.l.b16 %v450
    %v665 = vunpack.c.h.b16 %v450
    %v666 = vunpack.c.l.b16 %v451
    %v667 = vunpack.c.h.b16 %v451
    %v668 = vunpack.c.l.b16 %v452
    %v669 = vunpack.c.h.b16 %v452
    %v670 = vunpack.c.l.b16 %v453
    %v671 = vunpack.c.h.b16 %v453
    %v672 = vunpack.c.l.b16 %v454
    %v673 = vunpack.c.h.b16 %v454
    %v674 = vunpack.c.l.b16 %v455
    %v675 = vunpack.c.h.b16 %v455
    %v676 = vunpack.c.l.b16 %v456
    %v677 = vunpack.c.h.b16 %v456
    %v678 = vunpack.c.l.b16 %v457
    %v679 = vunpack.c.h.b16 %v457
    %v680 = vunpack.c.l.b16 %v458
    %v681 = vunpack.c.h.b16 %v458
    %v682 = vunpack.c.l.b16 %v459
    %v683 = vunpack.c.h.b16 %v459
    %v684 = vunpack.c.l.b16 %v460
    %v685 = vunpack.c.h.b16 %v460
    %v686 = vunpack.c.l.b16 %v461
    %v687 = vunpack.c.h.b16 %v461
    %v688 = vunpack.c.l.b16 %v462
    %v689 = vunpack.c.h.b16 %v462
    %v690 = vunpack.c.l.b16 %v463
    %v691 = vunpack.c.h.b16 %v463
    %v692 = vunpack.c.l.b16 %v464
    %v693 = vunpack.c.h.b16 %v464
    %v694 = vunpack.c.l.b16 %v465
    %v695 = vunpack.c.h.b16 %v465
    %v696 = vunpack.c.l.b16 %v466
    %v697 = vunpack.c.h.b16 %v466
    %v698 = vunpack.c.l.b16 %v467
    %v699 = vunpack.c.h.b16 %v467
    %v700 = vunpack.c.l.b16 %v468
    %v701 = vunpack.c.h.b16 %v468
    %v702 = vunpack.c.l.b16 %v469
    %v703 = vunpack.c.h.b16 %v469
    %v704 = vpack.c.b16 %v584, %v576
    %v705 = vpack.c.b16 %v585, %v577
    %v706 = vpack.c.b16 %v586, %v578
    %v707 = vpack.c.b16 %v587, %v579
    %v708 = vpack.c.b16 %v588, %v580
    %v709 = vpack.c.b16 %v589, %v581
    %v710 = vpack.c.b16 %v590, %v582
    %v711 = vpack.c.b16 %v591, %v583
    %v712 = vpack.c.b16 %v600, %v592
    %v713 = vpack.c.b16 %v601, %v593
    %v714 = vpack.c.b16 %v602, %v594
    %v715 = vpack.c.b16 %v603, %v595
    %v716 = vpack.c.b16 %v604, %v596
    %v717 = vpack.c.b16 %v605, %v597
    %v718 = vpack.c.b16 %v606, %v598
    %v719 = vpack.c.b16 %v607, %v599
    %v720 = vpack.c.b16 %v616, %v608
    %v721 = vpack.c.b16 %v617, %v609
    %v722 = vpack.c.b16 %v618, %v610
    %v723 = vpack.c.b16 %v619, %v611
    %v724 = vpack.c.b16 %v620, %v612
    %v725 = vpack.c.b16 %v621, %v613
    %v726 = vpack.c.b16 %v622, %v614
    %v727 = vpack.c.b16 %v623, %v615
    %v728 = vpack.c.b16 %v632, %v624
    %v729 = vpack.c.b16 %v633, %v625
    %v730 = vpack.c.b16 %v634, %v626
    %v731 = vpack.c.b16 %v635, %v627
    %v732 = vpack.c.b16 %v636, %v628
    %v733 = vpack.c.b16 %v637, %v629
    %v734 = vpack.c.b16 %v638, %v630
    %v735 = vpack.c.b16 %v639, %v631
    %v736 = vpack.c.b16 %v648, %v640
    %v737 = vpack.c.b16 %v649, %v641
    %v738 = vpack.c.b16 %v650, %v642
    %v739 = vpack.c.b16 %v651, %v643
    %v740 = vpack.c.b16 %v652, %v644
    %v741 = vpack.c.b16 %v653, %v645
    %v742 = vpack.c.b16 %v654, %v646
    %v743 = vpack.c.b16 %v655, %v647
    %v744 = vpack.c.b16 %v664, %v656
    %v745 = vpack.c.b16 %v665, %v657
    %v746 = vpack.c.b16 %v666, %v658
    %v747 = vpack.c.b16 %v667, %v659
    %v748 = vpack.c.b16 %v668, %v660
    %v749 = vpack.c.b16 %v669, %v661
    %v750 = vpack.c.b16 %v670, %v662
    %v751 = vpack.c.b16 %v671, %v663
    %v752 = vpack.c.b16 %v680, %v672
    %v753 = vpack.c.b16 %v681, %v673
    %v754 = vpack.c.b16 %v682, %v674
    %v755 = vpack.c.b16 %v683, %v675
    %v756 = vpack.c.b16 %v684, %v676
    %v757 = vpack.c.b16 %v685, %v677
    %v758 = vpack.c.b16 %v686, %v678
    %v759 = vpack.c.b16 %v687, %v679
    %v760 = vpack.c.b16 %v696, %v688
    %v761 = vpack.c.b16 %v697, %v689
    %v762 = vpack.c.b16 %v698, %v690
    %v763 = vpack.c.b16 %v699, %v691
    %v764 = vpack.c.b16 %v700, %v692
    %v765 = vpack.c.b16 %v701, %v693
    %v766 = vpack.c.b16 %v702, %v694
    %v767 = vpack.c.b16 %v703, %v695
    %832 = vmatprep.subr.bf16.mxu0 %v761
    %833 = vmatpush1.bf16.msra.mxu0 %v760
    %834 = vmatprep.subr.bf16.mxu0 %v753
    %835 = vmatpush1.bf16.msra.mxu0 %v752
    %836 = vmatprep.subr.bf16.mxu0 %v745
    %837 = vmatpush1.bf16.msra.mxu0 %v744
    %838 = vmatprep.subr.bf16.mxu0 %v737
    %839 = vmatpush1.bf16.msra.mxu0 %v736
    %840 = vmatprep.subr.bf16.mxu0 %v729
    %841 = vmatpush1.bf16.msra.mxu0 %v728
    %842 = vmatprep.subr.bf16.mxu0 %v721
    %843 = vmatpush1.bf16.msra.mxu0 %v720
    %844 = vmatprep.subr.bf16.mxu0 %v713
    %845 = vmatpush1.bf16.msra.mxu0 %v712
    %846 = vmatprep.subr.bf16.mxu0 %v705
    %847 = vmatpush1.bf16.msra.mxu0 %v704
    %848 = vmatprep.subr.bf16.mxu0 0
    %849 = vmatpush2.bf16.msra.mxu0 0
    %850 = vmatprep.subr.bf16.mxu0 0
    %851 = vmatpush2.bf16.msra.mxu0 0
    %852 = vmatprep.subr.bf16.mxu0 0
    %853 = vmatpush2.bf16.msra.mxu0 0
    %854 = vmatprep.subr.bf16.mxu0 0
    %855 = vmatpush2.bf16.msra.mxu0 0
    %856 = vmatprep.subr.bf16.mxu0 0
    %857 = vmatpush2.bf16.msra.mxu0 0
    %858 = vmatprep.subr.bf16.mxu0 0
    %859 = vmatpush2.bf16.msra.mxu0 0
    %860 = vmatprep.subr.bf16.mxu0 0
    %861 = vmatpush2.bf16.msra.mxu0 0
    %862 = vmatprep.subr.bf16.mxu0 0
    %863 = vmatpush2.bf16.msra.mxu0 0
    %864 = vmatprep.mubr.bf16.mxu0 0
    %865 = vmatmul.mubr.bf16.gmra.mxu0 %v405
    %v866 = vpop.f32.mrf.mxu0
    %v867 = vadd.f32 %v475, %v866
    %v868 = vpop.f32.mrf.mxu0
    %v869 = vadd.f32 %v479, %v868
    %v870 = vpop.f32.mrf.mxu0
    %v871 = vadd.f32 %v475, %v870
    %v872 = vpop.f32.mrf.mxu0
    %v873 = vadd.f32 %v479, %v872
    %874 = vdwg.mxu0
    %875 = vmatprep.subr.bf16.mxu0 %v763
    %876 = vmatpush1.bf16.msra.mxu0 %v762
    %877 = vmatprep.subr.bf16.mxu0 %v755
    %878 = vmatpush1.bf16.msra.mxu0 %v754
    %879 = vmatprep.subr.bf16.mxu0 %v747
    %880 = vmatpush1.bf16.msra.mxu0 %v746
    %881 = vmatprep.subr.bf16.mxu0 %v739
    %882 = vmatpush1.bf16.msra.mxu0 %v738
    %883 = vmatprep.subr.bf16.mxu0 %v731
    %884 = vmatpush1.bf16.msra.mxu0 %v730
    %885 = vmatprep.subr.bf16.mxu0 %v723
    %886 = vmatpush1.bf16.msra.mxu0 %v722
    %887 = vmatprep.subr.bf16.mxu0 %v715
    %888 = vmatpush1.bf16.msra.mxu0 %v714
    %889 = vmatprep.subr.bf16.mxu0 %v707
    %890 = vmatpush1.bf16.msra.mxu0 %v706
    %891 = vmatprep.subr.bf16.mxu0 0
    %892 = vmatpush2.bf16.msra.mxu0 0
    %893 = vmatprep.subr.bf16.mxu0 0
    %894 = vmatpush2.bf16.msra.mxu0 0
    %895 = vmatprep.subr.bf16.mxu0 0
    %896 = vmatpush2.bf16.msra.mxu0 0
    %897 = vmatprep.subr.bf16.mxu0 0
    %898 = vmatpush2.bf16.msra.mxu0 0
    %899 = vmatprep.subr.bf16.mxu0 0
    %900 = vmatpush2.bf16.msra.mxu0 0
    %901 = vmatprep.subr.bf16.mxu0 0
    %902 = vmatpush2.bf16.msra.mxu0 0
    %903 = vmatprep.subr.bf16.mxu0 0
    %904 = vmatpush2.bf16.msra.mxu0 0
    %905 = vmatprep.subr.bf16.mxu0 0
    %906 = vmatpush2.bf16.msra.mxu0 0
    %907 = vmatprep.mubr.bf16.mxu0 0
    %908 = vmatmul.mubr.bf16.gmra.mxu0 %v405
    %v909 = vpop.f32.mrf.mxu0
    %v910 = vadd.f32 %v483, %v909
    %v911 = vpop.f32.mrf.mxu0
    %v912 = vadd.f32 %v487, %v911
    %v913 = vpop.f32.mrf.mxu0
    %v914 = vadd.f32 %v483, %v913
    %v915 = vpop.f32.mrf.mxu0
    %v916 = vadd.f32 %v487, %v915
    %917 = vdwg.mxu0
    %918 = vmatprep.subr.bf16.mxu0 %v765
    %919 = vmatpush1.bf16.msra.mxu0 %v764
    %920 = vmatprep.subr.bf16.mxu0 %v757
    %921 = vmatpush1.bf16.msra.mxu0 %v756
    %922 = vmatprep.subr.bf16.mxu0 %v749
    %923 = vmatpush1.bf16.msra.mxu0 %v748
    %924 = vmatprep.subr.bf16.mxu0 %v741
    %925 = vmatpush1.bf16.msra.mxu0 %v740
    %926 = vmatprep.subr.bf16.mxu0 %v733
    %927 = vmatpush1.bf16.msra.mxu0 %v732
    %928 = vmatprep.subr.bf16.mxu0 %v725
    %929 = vmatpush1.bf16.msra.mxu0 %v724
    %930 = vmatprep.subr.bf16.mxu0 %v717
    %931 = vmatpush1.bf16.msra.mxu0 %v716
    %932 = vmatprep.subr.bf16.mxu0 %v709
    %933 = vmatpush1.bf16.msra.mxu0 %v708
    %934 = vmatprep.subr.bf16.mxu0 0
    %935 = vmatpush2.bf16.msra.mxu0 0
    %936 = vmatprep.subr.bf16.mxu0 0
    %937 = vmatpush2.bf16.msra.mxu0 0
    %938 = vmatprep.subr.bf16.mxu0 0
    %939 = vmatpush2.bf16.msra.mxu0 0
    %940 = vmatprep.subr.bf16.mxu0 0
    %941 = vmatpush2.bf16.msra.mxu0 0
    %942 = vmatprep.subr.bf16.mxu0 0
    %943 = vmatpush2.bf16.msra.mxu0 0
    %944 = vmatprep.subr.bf16.mxu0 0
    %945 = vmatpush2.bf16.msra.mxu0 0
    %946 = vmatprep.subr.bf16.mxu0 0
    %947 = vmatpush2.bf16.msra.mxu0 0
    %948 = vmatprep.subr.bf16.mxu0 0
    %949 = vmatpush2.bf16.msra.mxu0 0
    %950 = vmatprep.mubr.bf16.mxu0 0
    %951 = vmatmul.mubr.bf16.gmra.mxu0 %v405
    %v952 = vpop.f32.mrf.mxu0
    %v953 = vadd.f32 %v491, %v952
    %v954 = vpop.f32.mrf.mxu0
    %v955 = vadd.f32 %v495, %v954
    %v956 = vpop.f32.mrf.mxu0
    %v957 = vadd.f32 %v491, %v956
    %v958 = vpop.f32.mrf.mxu0
    %v959 = vadd.f32 %v495, %v958
    %960 = vdwg.mxu0
    %961 = vmatprep.subr.bf16.mxu0 %v767
    %962 = vmatpush1.bf16.msra.mxu0 %v766
    %963 = vmatprep.subr.bf16.mxu0 %v759
    %964 = vmatpush1.bf16.msra.mxu0 %v758
    %965 = vmatprep.subr.bf16.mxu0 %v751
    %966 = vmatpush1.bf16.msra.mxu0 %v750
    %967 = vmatprep.subr.bf16.mxu0 %v743
    %968 = vmatpush1.bf16.msra.mxu0 %v742
    %969 = vmatprep.subr.bf16.mxu0 %v735
    %970 = vmatpush1.bf16.msra.mxu0 %v734
    %971 = vmatprep.subr.bf16.mxu0 %v727
    %972 = vmatpush1.bf16.msra.mxu0 %v726
    %973 = vmatprep.subr.bf16.mxu0 %v719
    %974 = vmatpush1.bf16.msra.mxu0 %v718
    %975 = vmatprep.subr.bf16.mxu0 %v711
    %976 = vmatpush1.bf16.msra.mxu0 %v710
    %977 = vmatprep.subr.bf16.mxu0 0
    %978 = vmatpush2.bf16.msra.mxu0 0
    %979 = vmatprep.subr.bf16.mxu0 0
    %980 = vmatpush2.bf16.msra.mxu0 0
    %981 = vmatprep.subr.bf16.mxu0 0
    %982 = vmatpush2.bf16.msra.mxu0 0
    %983 = vmatprep.subr.bf16.mxu0 0
    %984 = vmatpush2.bf16.msra.mxu0 0
    %985 = vmatprep.subr.bf16.mxu0 0
    %986 = vmatpush2.bf16.msra.mxu0 0
    %987 = vmatprep.subr.bf16.mxu0 0
    %988 = vmatpush2.bf16.msra.mxu0 0
    %989 = vmatprep.subr.bf16.mxu0 0
    %990 = vmatpush2.bf16.msra.mxu0 0
    %991 = vmatprep.subr.bf16.mxu0 0
    %992 = vmatpush2.bf16.msra.mxu0 0
    %993 = vmatprep.mubr.bf16.mxu0 0
    %994 = vmatmul.mubr.bf16.gmra.mxu0 %v405
    %v995 = vpop.f32.mrf.mxu0
    %v996 = vadd.f32 %v499, %v995
    %v997 = vpop.f32.mrf.mxu0
    %v998 = vadd.f32 %v503, %v997
    %v999 = vpop.f32.mrf.mxu0
    %v1000 = vadd.f32 %v499, %v999
    %v1001 = vpop.f32.mrf.mxu0
    %v1002 = vadd.f32 %v503, %v1001
    %1003 = vdwg.mxu0
    %1004 = vst [vmem:[#allocation11] sm:$0xff] %v867
    %1005 = vst [vmem:[#allocation11 + $0x8] sm:$0xff] %v869
    %1006 = vst [vmem:[#allocation11 + $0x10] sm:$0xff] %v910
    %1007 = vst [vmem:[#allocation11 + $0x18] sm:$0xff] %v912
    %1008 = vst [vmem:[#allocation11 + $0x20] sm:$0xff] %v953
    %1009 = vst [vmem:[#allocation11 + $0x28] sm:$0xff] %v955
    %1010 = vst [vmem:[#allocation11 + $0x30] sm:$0xff] %v996
    %1011 = vst [vmem:[#allocation11 + $0x38] sm:$0xff] %v998
    %1012 = vst [vmem:[#allocation11 + $0x40] sm:$0xff] %v871
    %1013 = vst [vmem:[#allocation11 + $0x48] sm:$0xff] %v873
    %1014 = vst [vmem:[#allocation11 + $0x50] sm:$0xff] %v914
    %1015 = vst [vmem:[#allocation11 + $0x58] sm:$0xff] %v916
    %1016 = vst [vmem:[#allocation11 + $0x60] sm:$0xff] %v957
    %1017 = vst [vmem:[#allocation11 + $0x68] sm:$0xff] %v959
    %1018 = vst [vmem:[#allocation11 + $0x70] sm:$0xff] %v1000
    %1019 = vst [vmem:[#allocation11 + $0x78] sm:$0xff] %v1002
    // Predicated region
    $region58: #{tpu_custom_call.1} parent=1 // pred_check
      _
    $region59: #{tpu_custom_call.1} parent=1 // pred_check_branch
      %1021 = sbr.rel (0) target = $region61
    $region60: #{tpu_custom_call.1} parent=1 // pred_region
      %s1023 = ssub.s32 2048, 2048
      %1024 = vsyncadd [#allocation4], %s1023
      %s1025 = sshll.u32 [#allocation11], 4
      %s1026 = int_to_ptr.vmem [resolvable:$true] %s1025
      %1031 = dma.vmem_to_hbm [thread:$0]  %s1026, 2048, %s9, [#allocation4], 1024, 1024, 64
    $region61: #{tpu_custom_call.1} parent=1 // pred_fallthru
      _
    // Predicated region
    $region62: #{tpu_custom_call.1} parent=1 // pred_check
      _
    $region63: #{tpu_custom_call.1} parent=1 // pred_check_branch
      %1033 = sbr.rel (0) target = $region65
    $region64: #{tpu_custom_call.1} parent=1 // pred_region
      %1034 = dma.done [#allocation4], 2048
    $region65: #{tpu_custom_call.1} parent=1 // pred_fallthru
      _
    %1035 = vsyncpa [#allocation3], 1
    %1036 = vsyncpa [#allocation6], 1
    %1037 = vsyncpa [#allocation9], 1
    %1038 = vsyncpa [#allocation4], 1

</llo_original>
